<compile_context>
chip_gen: v5e
topology: v5e:2x2
jax: 0.10.0
libtpu: 0.0.40
codegen_flags: <defaults>
</compile_context>

<pallas_src>
import jax
import jax.numpy as jnp
import numpy as np
from jax.experimental import pallas as pl
from jax.experimental.pallas import tpu as pltpu

IN_SIZE = 4    # encoded-state feature size
HID = 16       # RNN hidden size
MLP = 64       # head width

# Row layout of the two packed parameter slabs (multiples of 8 sublanes).
_RNN_ROWS = 24     # rows 0:16 whT, 16:20 wxT, 20 bias
_HEAD_ROWS = 24    # rows 0:16 w1T, 16 b1, 17 w2, 18[,0] b2


def critic_kernel(states_ref, rnn_ref, head_ref, v_ref):
    # states_ref: [T*B, F]  time-major, flattened in the wrapper.
    # rnn_ref:    [24, 16]  packed recurrence params (whT / wxT / b).
    # head_ref:   [24, 64]  packed head params (w1T / b1 / w2 / b2).
    # v_ref:      [1, B]    lane-dense value row (reshaped to [B,1] outside).
    TB, F = states_ref.shape
    B = v_ref.shape[1]
    T = TB // B
    H = rnn_ref.shape[1]

    states = states_ref[...]                                   # [T*B, F]
    rnn = rnn_ref[...]                                         # [24, H]
    whT = rnn[0:H, :]                                          # [H, H]
    wxT = rnn[H:H + F, :]                                      # [F, H]
    b = rnn[H + F:H + F + 1, :]                                # [1, H]

    # ---- Hoisted out of the recurrence -------------------------------------
    # Input projection + bias as ONE [T*B, F] @ [F, H] matmul.
    xproj = jnp.dot(states, wxT,
                    preferred_element_type=jnp.float32) + b    # [T*B, H]
    # Per-step non-zero mask for all timesteps (one batched XLU reduce).
    nz = jnp.any(states != 0.0, axis=-1, keepdims=True)        # [T*B, 1] bool

    # ---- Recurrence: fully statically unrolled (T is small & static) -------
    # Per-step body: h = where(alive, tanh(xproj[t] + h @ whT), h)
    h = jnp.zeros((B, H), jnp.float32)
    alive = jnp.full((B, 1), True)                             # sticky "break"
    for t in range(T):
        lo = t * B                                             # static offset
        alive = jnp.logical_and(alive, nz[lo:lo + B])          # [B, 1] bool
        new_h = jnp.tanh(
            xproj[lo:lo + B]
            + jnp.dot(h, whT, preferred_element_type=jnp.float32))  # [B, H]
        h = jnp.where(alive, new_h, h)                         # single vselect

    # ---- MLP head: relu(Linear(H -> 64)) -> Linear(64 -> 1) ----------------
    head = head_ref[...]                                       # [24, MLP]
    w1T = head[0:H, :]                                         # [H, MLP]
    b1 = head[H:H + 1, :]                                      # [1, MLP]
    w2 = head[H + 1:H + 2, :]                                  # [1, MLP]
    b2 = head[H + 2:H + 3, 0:1]                                # [1, 1]

    act = jnp.maximum(
        jnp.dot(h, w1T, preferred_element_type=jnp.float32) + b1, 0.0)  # [B, MLP]
    # Lane-dense output: contract w2 [1,MLP] against act [B,MLP] -> [1, B]
    # (B sits on the lane axis); wrapper reshapes to [B, 1].
    v_row = jax.lax.dot_general(
        w2, act,
        dimension_numbers=(((1,), (1,)), ((), ())),
        preferred_element_type=jnp.float32) + b2               # [1, B]
    v_ref[...] = v_row.astype(v_ref.dtype)


def pack_critic_params(wx, wh, b, w1, b1, w2, b2):
    """One-time packing of the 7 Critic parameters into 2 f32 slabs.

    Per forward call this means 3 input DMAs (states + 2 slabs) instead of 8,
    and all transposes/casts happen once at init, not per call.
    """
    H, F = wx.shape
    M = w1.shape[0]

    rnn = jnp.zeros((_RNN_ROWS, H), jnp.float32)
    rnn = rnn.at[0:H, :].set(jnp.asarray(wh, jnp.float32).T)          # whT
    rnn = rnn.at[H:H + F, :].set(jnp.asarray(wx, jnp.float32).T)      # wxT
    rnn = rnn.at[H + F, :].set(jnp.asarray(b, jnp.float32).reshape(H))

    head = jnp.zeros((_HEAD_ROWS, M), jnp.float32)
    head = head.at[0:H, :].set(jnp.asarray(w1, jnp.float32).T)        # w1T
    head = head.at[H, :].set(jnp.asarray(b1, jnp.float32).reshape(M))
    head = head.at[H + 1, :].set(jnp.asarray(w2, jnp.float32).reshape(M))
    head = head.at[H + 2, 0].set(jnp.asarray(b2, jnp.float32).reshape(()))
    return rnn, head


@jax.jit
def critic_forward(states, rnn_pack, head_pack):
    """states: [B, T, 4] (or [T, 4] for a single sequence). Returns [B, 1]."""
    if states.ndim == 2:
        states = states[None]                 # single sequence -> [1, T, F]
    B, T, F = states.shape

    # Time-major flatten in the wrapper: pure layout plumbing (fuses under
    # jit), avoids any in-kernel reshape / VMEM relayout.
    states_flat = (jnp.transpose(states, (1, 0, 2))
                   .reshape(T * B, F).astype(jnp.float32))

    # Problem is tiny -> gridless, everything resident in VMEM.
    # TODO(synk): if B grows, add a batch grid axis with
    # dimension_semantics=("parallel",), carry h as [H, B] so B sits on the
    # 128-lane axis, and size per-block VMEM for v7x's 32 MiB scoped limit.
    v_row = pl.pallas_call(
        critic_kernel,
        out_shape=jax.ShapeDtypeStruct((1, B), jnp.float32),
        in_specs=[pl.BlockSpec(memory_space=pltpu.MemorySpace.VMEM)] * 3,
        out_specs=pl.BlockSpec(memory_space=pltpu.MemorySpace.VMEM),
    )(states_flat, rnn_pack, head_pack)
    return v_row.reshape(B, 1)                # lane-dense [1, B] -> [B, 1]


def critic_reference(states, wx, wh, b, w1, b1, w2, b2):
    """Pure numpy mirror of the PyTorch loop (for correctness check)."""
    states = np.asarray(states)
    wx, wh, b = np.asarray(wx), np.asarray(wh), np.asarray(b)
    w1, b1, w2, b2 = map(np.asarray, (w1, b1, w2, b2))
    if states.ndim == 2:
        states = states[None]
    outs = []
    for seq in states:
        h = np.zeros((wx.shape[0], 1), np.float32)
        for x in seq:
            if not np.all(x == 0):
                h = np.tanh(wx @ x[:, None] + wh @ h + b)
            else:
                break
        # TODO(synk): if a sequence has zero valid steps, PyTorch returns
        # uninitialized torch.empty memory; we return zeros instead.
        outs.append(h[:, 0])
    to_mlp = np.stack(outs).astype(np.float32)        # [B, H]
    act = np.maximum(to_mlp @ w1.T + b1, 0.0)
    return act @ w2.T + b2                            # [B, 1]


if __name__ == "__main__":
    key = jax.random.PRNGKey(0)
    kx, kh, k1, k2, ks = jax.random.split(key, 5)

    # Deterministic parameter init (shapes from Critic.__init__).
    wx = jax.random.normal(kx, (HID, IN_SIZE), jnp.float32)   # nn.Parameter randn
    wh = jax.random.normal(kh, (HID, HID), jnp.float32)       # nn.Parameter randn
    b = jnp.zeros((HID, 1), jnp.float32)                      # nn.Parameter zeros
    w1 = jax.random.normal(k1, (MLP, HID), jnp.float32) * 0.1  # Linear(16, 64)
    b1 = jnp.zeros((MLP,), jnp.float32)
    w2 = jax.random.normal(k2, (1, MLP), jnp.float32) * 0.1    # Linear(64, 1)
    b2 = jnp.zeros((1,), jnp.float32)

    # One-time parameter packing (hoisted out of the per-call hot path).
    rnn_pack, head_pack = pack_critic_params(wx, wh, b, w1, b1, w2, b2)
    rnn_pack = jax.block_until_ready(rnn_pack)
    head_pack = jax.block_until_ready(head_pack)

    # Small batch of sequences: [B, T, 4], zero-padded tails trigger the break.
    B, T = 8, 8
    states = jax.random.normal(ks, (B, T, IN_SIZE), jnp.float32)
    lengths = jnp.array([8, 5, 3, 8, 1, 7, 2, 6])
    t_idx = jnp.arange(T)[None, :, None]
    states = jnp.where(t_idx < lengths[:, None, None], states, 0.0)

    v = jax.block_until_ready(critic_forward(states, rnn_pack, head_pack))
    v_ref = critic_reference(states, wx, wh, b, w1, b1, w2, b2)
    assert v.shape == (B, 1)
    assert np.allclose(np.asarray(v), v_ref, atol=1e-4, rtol=1e-4), (v, v_ref)

    # Also exercise the 2-D (single sequence) path.
    v1 = jax.block_until_ready(critic_forward(states[0], rnn_pack, head_pack))
    assert v1.shape == (1, 1)
    assert np.allclose(np.asarray(v1),
                       critic_reference(states[0], wx, wh, b, w1, b1, w2, b2),
                       atol=1e-4, rtol=1e-4)

    print("KERNEL_OK")
</pallas_src>

<mosaic_0001>
module attributes {stable_mosaic.version = 11 : i64} {
  func.func @critic_kernel(%arg0: memref<64x4xf32, #tpu.memory_space<vmem>>, %arg1: memref<24x16xf32, #tpu.memory_space<vmem>>, %arg2: memref<24x64xf32, #tpu.memory_space<vmem>>, %arg3: memref<1x8xf32, #tpu.memory_space<vmem>>) attributes {dimension_semantics = [], scalar_prefetch = 0 : i64, scratch_operands = 0 : i64, tpu.core_type = #tpu.core_type<tc>} {
    %c0 = arith.constant 0 : index
    %c0_0 = arith.constant 0 : index
    %0 = vector.load %arg0[%c0, %c0_0] : memref<64x4xf32, #tpu.memory_space<vmem>>, vector<64x4xf32>
    %c0_1 = arith.constant 0 : index
    %c0_2 = arith.constant 0 : index
    %1 = vector.load %arg1[%c0_1, %c0_2] : memref<24x16xf32, #tpu.memory_space<vmem>>, vector<24x16xf32>
    %2 = vector.extract_strided_slice %1 {offsets = [0, 0], sizes = [16, 16], strides = [1, 1]} : vector<24x16xf32> to vector<16x16xf32>
    %3 = vector.extract_strided_slice %1 {offsets = [16, 0], sizes = [4, 16], strides = [1, 1]} : vector<24x16xf32> to vector<4x16xf32>
    %4 = vector.extract_strided_slice %1 {offsets = [20, 0], sizes = [1, 16], strides = [1, 1]} : vector<24x16xf32> to vector<1x16xf32>
    %cst = arith.constant dense<0.000000e+00> : vector<64x16xf32>
    %5 = tpu.matmul %0, %3, %cst {dimension_numbers = #tpu.dot_dimension_numbers<[1], [0], [0], [1], [0, 0, 1, 1], [], []>} : vector<64x4xf32>, vector<4x16xf32>, vector<64x16xf32> -> vector<64x16xf32>
    %6 = vector.broadcast %4 : vector<1x16xf32> to vector<64x16xf32>
    %7 = arith.addf %5, %6 : vector<64x16xf32>
    %cst_3 = arith.constant 0.000000e+00 : f32
    %8 = vector.broadcast %cst_3 : f32 to vector<64x4xf32>
    %9 = arith.cmpf one, %0, %8 : vector<64x4xf32>
    %cst_4 = arith.constant 1.000000e+00 : f32
    %cst_5 = arith.constant 0.000000e+00 : f32
    %10 = vector.broadcast %cst_4 : f32 to vector<64x4xf32>
    %11 = vector.broadcast %cst_5 : f32 to vector<64x4xf32>
    %12 = arith.select %9, %10, %11 : vector<64x4xi1>, vector<64x4xf32>
    %cst_6 = arith.constant dense<0xFF800000> : vector<64xf32>
    %13 = vector.multi_reduction <maximumf>, %12, %cst_6 [1] : vector<64x4xf32> to vector<64xf32>
    %cst_7 = arith.constant 0.000000e+00 : f32
    %14 = vector.broadcast %cst_7 : f32 to vector<64xf32>
    %15 = arith.cmpf ogt, %13, %14 : vector<64xf32>
    %16 = vector.shape_cast %15 : vector<64xi1> to vector<64x1xi1>
    %cst_8 = arith.constant 0.000000e+00 : f32
    %17 = vector.broadcast %cst_8 : f32 to vector<8x16xf32>
    %true = arith.constant true
    %18 = vector.broadcast %true : i1 to vector<8x1xi1>
    %19 = vector.extract_strided_slice %16 {offsets = [0, 0], sizes = [8, 1], strides = [1, 1]} : vector<64x1xi1> to vector<8x1xi1>
    %20 = arith.andi %18, %19 : vector<8x1xi1>
    %21 = vector.extract_strided_slice %7 {offsets = [0, 0], sizes = [8, 16], strides = [1, 1]} : vector<64x16xf32> to vector<8x16xf32>
    %cst_9 = arith.constant dense<0.000000e+00> : vector<8x16xf32>
    %22 = tpu.matmul %17, %2, %cst_9 {dimension_numbers = #tpu.dot_dimension_numbers<[1], [0], [0], [1], [0, 0, 1, 1], [], []>} : vector<8x16xf32>, vector<16x16xf32>, vector<8x16xf32> -> vector<8x16xf32>
    %23 = arith.addf %21, %22 : vector<8x16xf32>
    %24 = math.tanh %23 : vector<8x16xf32>
    %25 = vector.shape_cast %20 : vector<8x1xi1> to vector<8x1xi1>
    %26 = vector.broadcast %25 : vector<8x1xi1> to vector<8x16xi1>
    %27 = arith.select %26, %24, %17 : vector<8x16xi1>, vector<8x16xf32>
    %28 = vector.extract_strided_slice %16 {offsets = [8, 0], sizes = [8, 1], strides = [1, 1]} : vector<64x1xi1> to vector<8x1xi1>
    %29 = arith.andi %20, %28 : vector<8x1xi1>
    %30 = vector.extract_strided_slice %7 {offsets = [8, 0], sizes = [8, 16], strides = [1, 1]} : vector<64x16xf32> to vector<8x16xf32>
    %cst_10 = arith.constant dense<0.000000e+00> : vector<8x16xf32>
    %31 = tpu.matmul %27, %2, %cst_10 {dimension_numbers = #tpu.dot_dimension_numbers<[1], [0], [0], [1], [0, 0, 1, 1], [], []>} : vector<8x16xf32>, vector<16x16xf32>, vector<8x16xf32> -> vector<8x16xf32>
    %32 = arith.addf %30, %31 : vector<8x16xf32>
    %33 = math.tanh %32 : vector<8x16xf32>
    %34 = vector.shape_cast %29 : vector<8x1xi1> to vector<8x1xi1>
    %35 = vector.broadcast %34 : vector<8x1xi1> to vector<8x16xi1>
    %36 = arith.select %35, %33, %27 : vector<8x16xi1>, vector<8x16xf32>
    %37 = vector.extract_strided_slice %16 {offsets = [16, 0], sizes = [8, 1], strides = [1, 1]} : vector<64x1xi1> to vector<8x1xi1>
    %38 = arith.andi %29, %37 : vector<8x1xi1>
    %39 = vector.extract_strided_slice %7 {offsets = [16, 0], sizes = [8, 16], strides = [1, 1]} : vector<64x16xf32> to vector<8x16xf32>
    %cst_11 = arith.constant dense<0.000000e+00> : vector<8x16xf32>
    %40 = tpu.matmul %36, %2, %cst_11 {dimension_numbers = #tpu.dot_dimension_numbers<[1], [0], [0], [1], [0, 0, 1, 1], [], []>} : vector<8x16xf32>, vector<16x16xf32>, vector<8x16xf32> -> vector<8x16xf32>
    %41 = arith.addf %39, %40 : vector<8x16xf32>
    %42 = math.tanh %41 : vector<8x16xf32>
    %43 = vector.shape_cast %38 : vector<8x1xi1> to vector<8x1xi1>
    %44 = vector.broadcast %43 : vector<8x1xi1> to vector<8x16xi1>
    %45 = arith.select %44, %42, %36 : vector<8x16xi1>, vector<8x16xf32>
    %46 = vector.extract_strided_slice %16 {offsets = [24, 0], sizes = [8, 1], strides = [1, 1]} : vector<64x1xi1> to vector<8x1xi1>
    %47 = arith.andi %38, %46 : vector<8x1xi1>
    %48 = vector.extract_strided_slice %7 {offsets = [24, 0], sizes = [8, 16], strides = [1, 1]} : vector<64x16xf32> to vector<8x16xf32>
    %cst_12 = arith.constant dense<0.000000e+00> : vector<8x16xf32>
    %49 = tpu.matmul %45, %2, %cst_12 {dimension_numbers = #tpu.dot_dimension_numbers<[1], [0], [0], [1], [0, 0, 1, 1], [], []>} : vector<8x16xf32>, vector<16x16xf32>, vector<8x16xf32> -> vector<8x16xf32>
    %50 = arith.addf %48, %49 : vector<8x16xf32>
    %51 = math.tanh %50 : vector<8x16xf32>
    %52 = vector.shape_cast %47 : vector<8x1xi1> to vector<8x1xi1>
    %53 = vector.broadcast %52 : vector<8x1xi1> to vector<8x16xi1>
    %54 = arith.select %53, %51, %45 : vector<8x16xi1>, vector<8x16xf32>
    %55 = vector.extract_strided_slice %16 {offsets = [32, 0], sizes = [8, 1], strides = [1, 1]} : vector<64x1xi1> to vector<8x1xi1>
    %56 = arith.andi %47, %55 : vector<8x1xi1>
    %57 = vector.extract_strided_slice %7 {offsets = [32, 0], sizes = [8, 16], strides = [1, 1]} : vector<64x16xf32> to vector<8x16xf32>
    %cst_13 = arith.constant dense<0.000000e+00> : vector<8x16xf32>
    %58 = tpu.matmul %54, %2, %cst_13 {dimension_numbers = #tpu.dot_dimension_numbers<[1], [0], [0], [1], [0, 0, 1, 1], [], []>} : vector<8x16xf32>, vector<16x16xf32>, vector<8x16xf32> -> vector<8x16xf32>
    %59 = arith.addf %57, %58 : vector<8x16xf32>
    %60 = math.tanh %59 : vector<8x16xf32>
    %61 = vector.shape_cast %56 : vector<8x1xi1> to vector<8x1xi1>
    %62 = vector.broadcast %61 : vector<8x1xi1> to vector<8x16xi1>
    %63 = arith.select %62, %60, %54 : vector<8x16xi1>, vector<8x16xf32>
    %64 = vector.extract_strided_slice %16 {offsets = [40, 0], sizes = [8, 1], strides = [1, 1]} : vector<64x1xi1> to vector<8x1xi1>
    %65 = arith.andi %56, %64 : vector<8x1xi1>
    %66 = vector.extract_strided_slice %7 {offsets = [40, 0], sizes = [8, 16], strides = [1, 1]} : vector<64x16xf32> to vector<8x16xf32>
    %cst_14 = arith.constant dense<0.000000e+00> : vector<8x16xf32>
    %67 = tpu.matmul %63, %2, %cst_14 {dimension_numbers = #tpu.dot_dimension_numbers<[1], [0], [0], [1], [0, 0, 1, 1], [], []>} : vector<8x16xf32>, vector<16x16xf32>, vector<8x16xf32> -> vector<8x16xf32>
    %68 = arith.addf %66, %67 : vector<8x16xf32>
    %69 = math.tanh %68 : vector<8x16xf32>
    %70 = vector.shape_cast %65 : vector<8x1xi1> to vector<8x1xi1>
    %71 = vector.broadcast %70 : vector<8x1xi1> to vector<8x16xi1>
    %72 = arith.select %71, %69, %63 : vector<8x16xi1>, vector<8x16xf32>
    %73 = vector.extract_strided_slice %16 {offsets = [48, 0], sizes = [8, 1], strides = [1, 1]} : vector<64x1xi1> to vector<8x1xi1>
    %74 = arith.andi %65, %73 : vector<8x1xi1>
    %75 = vector.extract_strided_slice %7 {offsets = [48, 0], sizes = [8, 16], strides = [1, 1]} : vector<64x16xf32> to vector<8x16xf32>
    %cst_15 = arith.constant dense<0.000000e+00> : vector<8x16xf32>
    %76 = tpu.matmul %72, %2, %cst_15 {dimension_numbers = #tpu.dot_dimension_numbers<[1], [0], [0], [1], [0, 0, 1, 1], [], []>} : vector<8x16xf32>, vector<16x16xf32>, vector<8x16xf32> -> vector<8x16xf32>
    %77 = arith.addf %75, %76 : vector<8x16xf32>
    %78 = math.tanh %77 : vector<8x16xf32>
    %79 = vector.shape_cast %74 : vector<8x1xi1> to vector<8x1xi1>
    %80 = vector.broadcast %79 : vector<8x1xi1> to vector<8x16xi1>
    %81 = arith.select %80, %78, %72 : vector<8x16xi1>, vector<8x16xf32>
    %82 = vector.extract_strided_slice %16 {offsets = [56, 0], sizes = [8, 1], strides = [1, 1]} : vector<64x1xi1> to vector<8x1xi1>
    %83 = arith.andi %74, %82 : vector<8x1xi1>
    %84 = vector.extract_strided_slice %7 {offsets = [56, 0], sizes = [8, 16], strides = [1, 1]} : vector<64x16xf32> to vector<8x16xf32>
    %cst_16 = arith.constant dense<0.000000e+00> : vector<8x16xf32>
    %85 = tpu.matmul %81, %2, %cst_16 {dimension_numbers = #tpu.dot_dimension_numbers<[1], [0], [0], [1], [0, 0, 1, 1], [], []>} : vector<8x16xf32>, vector<16x16xf32>, vector<8x16xf32> -> vector<8x16xf32>
    %86 = arith.addf %84, %85 : vector<8x16xf32>
    %87 = math.tanh %86 : vector<8x16xf32>
    %88 = vector.shape_cast %83 : vector<8x1xi1> to vector<8x1xi1>
    %89 = vector.broadcast %88 : vector<8x1xi1> to vector<8x16xi1>
    %90 = arith.select %89, %87, %81 : vector<8x16xi1>, vector<8x16xf32>
    %c0_17 = arith.constant 0 : index
    %c0_18 = arith.constant 0 : index
    %91 = vector.load %arg2[%c0_17, %c0_18] : memref<24x64xf32, #tpu.memory_space<vmem>>, vector<24x64xf32>
    %92 = vector.extract_strided_slice %91 {offsets = [0, 0], sizes = [16, 64], strides = [1, 1]} : vector<24x64xf32> to vector<16x64xf32>
    %93 = vector.extract_strided_slice %91 {offsets = [16, 0], sizes = [1, 64], strides = [1, 1]} : vector<24x64xf32> to vector<1x64xf32>
    %94 = vector.extract_strided_slice %91 {offsets = [17, 0], sizes = [1, 64], strides = [1, 1]} : vector<24x64xf32> to vector<1x64xf32>
    %95 = vector.extract_strided_slice %91 {offsets = [18, 0], sizes = [1, 1], strides = [1, 1]} : vector<24x64xf32> to vector<1x1xf32>
    %cst_19 = arith.constant dense<0.000000e+00> : vector<8x64xf32>
    %96 = tpu.matmul %90, %92, %cst_19 {dimension_numbers = #tpu.dot_dimension_numbers<[1], [0], [0], [1], [0, 0, 1, 1], [], []>} : vector<8x16xf32>, vector<16x64xf32>, vector<8x64xf32> -> vector<8x64xf32>
    %97 = vector.broadcast %93 : vector<1x64xf32> to vector<8x64xf32>
    %98 = arith.addf %96, %97 : vector<8x64xf32>
    %cst_20 = arith.constant 0.000000e+00 : f32
    %99 = vector.broadcast %cst_20 : f32 to vector<8x64xf32>
    %100 = arith.maximumf %98, %99 : vector<8x64xf32>
    %cst_21 = arith.constant dense<0.000000e+00> : vector<1x8xf32>
    %101 = tpu.matmul %94, %100, %cst_21 {dimension_numbers = #tpu.dot_dimension_numbers<[1], [1], [0], [0], [0, 0, 1, 0], [], []>} : vector<1x64xf32>, vector<8x64xf32>, vector<1x8xf32> -> vector<1x8xf32>
    %102 = vector.broadcast %95 : vector<1x1xf32> to vector<1x8xf32>
    %103 = arith.addf %101, %102 : vector<1x8xf32>
    %c0_22 = arith.constant 0 : index
    %c0_23 = arith.constant 0 : index
    %104 = vector.load %arg3[%c0_22, %c0_23] : memref<1x8xf32, #tpu.memory_space<vmem>>, vector<1x8xf32>
    tpu.vector_store %arg3[%c0_22, %c0_23], %103 {strides = array<i32>} : memref<1x8xf32, #tpu.memory_space<vmem>>, vector<1x8xf32>,
    return
  }
}

</mosaic_0001>

<llo_original>
// kernel: critic_forward.1
$region0: #{critic_forward.1}
  #allocation0 [shape = 'u32[]', space=smem, size = 0x4, offset = 0x4, fixed_abs, tag = 'smem constant byte address 0x4 - core index']
  #allocation1 [shape = 'u32[72,128]{1,0:T(1,128)}', space=vmem, size = 0x9000, scoped, tag = 'internal scratch']
  %s0 = inlined_call_operand.vmem [shape: f32[64,4], index: 0, kind: input, shape index: {}]
  %s1 = inlined_call_operand.vmem [shape: f32[24,16], index: 1, kind: input, shape index: {}]
  %s2 = inlined_call_operand.vmem [shape: f32[24,64], index: 2, kind: input, shape index: {}]
  %s3 = inlined_call_operand.hbm [shape: f32[1,8], index: 3, kind: output, shape index: {}]
  %s4 = sld [smem:[#allocation0]]
  $region22: #{critic_forward.1} parent=0
    _
  %s6 = ssub.s32 1, %s4
  %s7 = scalar_select 0, %s6, %s4
  $region1: #{critic_forward.1} parent=0
    #allocation2 [shape = 'u8[512]{0}', space=vmem, size = 0x400, scoped, tag = 'output window, operand 0, single buffered']
    #allocation3 [shape = 's32[1]{0}', space=sflag, size = 0x4, scoped, tag = 'scoped memory for critic_forward.1']
    %8 = vsyncpa [#allocation3], 0
    // Predicated region
    $region2: #{critic_forward.1} parent=1 // pred_check
      _
    $region3: #{critic_forward.1} parent=1 // pred_check_branch
      %10 = sbr.rel (0) target = $region5
    $region4: #{critic_forward.1} parent=1 // pred_region
      _
    $region5: #{critic_forward.1} parent=1 // pred_fallthru
      _
    // Predicated region
    $region6: #{critic_forward.1} parent=1 // pred_check
      _
    $region7: #{critic_forward.1} parent=1 // pred_check_branch
      %12 = sbr.rel (0) target = $region9
    $region8: #{critic_forward.1} parent=1 // pred_region
      _
    $region9: #{critic_forward.1} parent=1 // pred_fallthru
      _
    // Predicated region
    $region10: #{critic_forward.1} parent=1 // pred_check
      _
    $region11: #{critic_forward.1} parent=1 // pred_check_branch
      %14 = sbr.rel (0) target = $region13
    $region12: #{critic_forward.1} parent=1 // pred_region
      _
    $region13: #{critic_forward.1} parent=1 // pred_fallthru
      _
    %v15 = vld [vmem:[%s0] sm:$0xff]
    %v16 = vld [vmem:[%s0 + $0x8] sm:$0xff]
    %v17 = vld [vmem:[%s0 + $0x10] sm:$0xff]
    %v18 = vld [vmem:[%s0 + $0x18] sm:$0xff]
    %v19 = vld [vmem:[%s0 + $0x20] sm:$0xff]
    %v20 = vld [vmem:[%s0 + $0x28] sm:$0xff]
    %v21 = vld [vmem:[%s0 + $0x30] sm:$0xff]
    %v22 = vld [vmem:[%s0 + $0x38] sm:$0xff]
    %v23 = vld [vmem:[%s1] sm:$0xff]
    %v24 = vld [vmem:[%s1 + $0x8] sm:$0xff]
    %v25 = vld [vmem:[%s1 + $0x10] sm:$0xff]
    %v26 = vperm.slane %v25, 4
    %vm27 = vcmask 31744
    %v29 = vsel %vm27, %v15, 0
    %v32 = vsel %vm27, %v16, 0
    %v35 = vsel %vm27, %v17, 0
    %v38 = vsel %vm27, %v18, 0
    %v41 = vsel %vm27, %v19, 0
    %v44 = vsel %vm27, %v20, 0
    %v47 = vsel %vm27, %v21, 0
    %v50 = vsel %vm27, %v22, 0
    %vm52 = vcmask 1043456
    %v54 = vsel %vm52, %v25, 0
    %56 = vmatpush.msra.mxu0 0.0
    %57 = vmatpush.msra.mxu0 0.0
    %58 = vmatpush.msra.mxu0 0.0
    %59 = vmatpush.msra.mxu0 0.0
    %60 = vmatpush.msra.mxu0 0.0
    %61 = vmatpush.msra.mxu0 0.0
    %62 = vmatpush.msra.mxu0 0.0
    %63 = vmatpush.msra.mxu0 0.0
    %64 = vmatpush.msra.mxu0 0.0
    %65 = vmatpush.msra.mxu0 0.0
    %66 = vmatpush.msra.mxu0 0.0
    %67 = vmatpush.msra.mxu0 0.0
    %68 = vmatpush.msra.mxu0 0.0
    %69 = vmatpush.msra.mxu0 0.0
    %70 = vmatpush.msra.mxu0 0.0
    %71 = vmatpush.msra.mxu0 %v54
    %72 = vmatmul.f32.gmra.mxu0 %v29
    %v73 = vpop.f32.mrf.mxu0
    %v74 = vadd.f32 %v26, %v73
    %75 = vmatmul.f32.gmra.mxu0 %v32
    %v76 = vpop.f32.mrf.mxu0
    %v77 = vadd.f32 %v26, %v76
    %78 = vmatmul.f32.gmra.mxu0 %v35
    %v79 = vpop.f32.mrf.mxu0
    %v80 = vadd.f32 %v26, %v79
    %81 = vmatmul.f32.gmra.mxu0 %v38
    %v82 = vpop.f32.mrf.mxu0
    %v83 = vadd.f32 %v26, %v82
    %84 = vmatmul.f32.gmra.mxu0 %v41
    %v85 = vpop.f32.mrf.mxu0
    %v86 = vadd.f32 %v26, %v85
    %87 = vmatmul.f32.gmra.mxu0 %v44
    %v88 = vpop.f32.mrf.mxu0
    %v89 = vadd.f32 %v26, %v88
    %90 = vmatmul.f32.gmra.mxu0 %v47
    %v91 = vpop.f32.mrf.mxu0
    %v92 = vadd.f32 %v26, %v91
    %93 = vmatmul.f32.gmra.mxu0 %v50
    %v94 = vpop.f32.mrf.mxu0
    %v95 = vadd.f32 %v26, %v94
    %96 = vdwg.mxu0
    %vm97 = vcmp.ne.f32.partialorder %v15, 0.0
    %vm98 = vcmp.ne.f32.partialorder %v16, 0.0
    %vm99 = vcmp.ne.f32.partialorder %v17, 0.0
    %vm100 = vcmp.ne.f32.partialorder %v18, 0.0
    %vm101 = vcmp.ne.f32.partialorder %v19, 0.0
    %vm102 = vcmp.ne.f32.partialorder %v20, 0.0
    %vm103 = vcmp.ne.f32.partialorder %v21, 0.0
    %vm104 = vcmp.ne.f32.partialorder %v22, 0.0
    %v105 = vsel %vm97, 1.0, 0.0
    %v106 = vsel %vm98, 1.0, 0.0
    %v107 = vsel %vm99, 1.0, 0.0
    %v108 = vsel %vm100, 1.0, 0.0
    %v109 = vsel %vm101, 1.0, 0.0
    %v110 = vsel %vm102, 1.0, 0.0
    %v111 = vsel %vm103, 1.0, 0.0
    %v112 = vsel %vm104, 1.0, 0.0
    %v113 = vsel %vm27, %v105, -inf
    %114 = vmax.xlane.f32.xlu0 %v113
    %v115 = vpop.xlane.xlu0 %114
    %v116 = vsel %vm27, %v106, -inf
    %117 = vmax.xlane.f32.xlu0 %v116
    %v118 = vpop.xlane.xlu0 %117
    %v119 = vsel %vm27, %v107, -inf
    %120 = vmax.xlane.f32.xlu0 %v119
    %v121 = vpop.xlane.xlu0 %120
    %v122 = vsel %vm27, %v108, -inf
    %123 = vmax.xlane.f32.xlu0 %v122
    %v124 = vpop.xlane.xlu0 %123
    %v125 = vsel %vm27, %v109, -inf
    %126 = vmax.xlane.f32.xlu0 %v125
    %v127 = vpop.xlane.xlu0 %126
    %v128 = vsel %vm27, %v110, -inf
    %129 = vmax.xlane.f32.xlu0 %v128
    %v130 = vpop.xlane.xlu0 %129
    %v131 = vsel %vm27, %v111, -inf
    %132 = vmax.xlane.f32.xlu0 %v131
    %v133 = vpop.xlane.xlu0 %132
    %v134 = vsel %vm27, %v112, -inf
    %135 = vmax.xlane.f32.xlu0 %v134
    %v136 = vpop.xlane.xlu0 %135
    %vm137 = vcmp.gt.f32.partialorder %v115, 0.0
    %vm138 = vcmp.gt.f32.partialorder %v118, 0.0
    %vm139 = vcmp.gt.f32.partialorder %v121, 0.0
    %vm140 = vcmp.gt.f32.partialorder %v124, 0.0
    %vm141 = vcmp.gt.f32.partialorder %v127, 0.0
    %vm142 = vcmp.gt.f32.partialorder %v130, 0.0
    %vm143 = vcmp.gt.f32.partialorder %v133, 0.0
    %vm144 = vcmp.gt.f32.partialorder %v136, 0.0
    %vm145 = vcmask 130048
    %v147 = vsel %vm145, 0.0, 0
    %149 = vmatpush.msra.mxu0 0.0
    %150 = vmatpush.msra.mxu0 0.0
    %151 = vmatpush.msra.mxu0 0.0
    %152 = vmatpush.msra.mxu0 0.0
    %153 = vmatpush.msra.mxu0 0.0
    %154 = vmatpush.msra.mxu0 0.0
    %155 = vmatpush.msra.mxu0 0.0
    %156 = vmatpush.msra.mxu0 0.0
    %157 = vmatpush.msra.mxu0 0.0
    %158 = vmatpush.msra.mxu0 0.0
    %159 = vmatpush.msra.mxu0 0.0
    %160 = vmatpush.msra.mxu0 0.0
    %161 = vmatpush.msra.mxu0 0.0
    %162 = vmatpush.msra.mxu0 0.0
    %163 = vmatpush.msra.mxu0 %v24
    %164 = vmatpush.msra.mxu0 %v23
    %165 = vmatmul.f32.gmra.mxu0 %v147
    %v166 = vpop.f32.mrf.mxu0
    %v167 = vadd.f32 0.0, %v166
    %168 = vdwg.mxu0
    %v169 = vadd.f32 %v74, %v167
    %v170 = vtanh.pop %v169
    %v171 = vsel %vm137, 1, 0
    %vm172 = vcmp.eq.s32.totalorder %v171, 1
    %v173 = vsel %vm172, %v170, 0.0
    %vm174 = vmand %vm137, %vm138
    %v176 = vsel %vm145, %v173, 0
    %178 = vmatpush.msra.mxu0 0.0
    %179 = vmatpush.msra.mxu0 0.0
    %180 = vmatpush.msra.mxu0 0.0
    %181 = vmatpush.msra.mxu0 0.0
    %182 = vmatpush.msra.mxu0 0.0
    %183 = vmatpush.msra.mxu0 0.0
    %184 = vmatpush.msra.mxu0 0.0
    %185 = vmatpush.msra.mxu0 0.0
    %186 = vmatpush.msra.mxu0 0.0
    %187 = vmatpush.msra.mxu0 0.0
    %188 = vmatpush.msra.mxu0 0.0
    %189 = vmatpush.msra.mxu0 0.0
    %190 = vmatpush.msra.mxu0 0.0
    %191 = vmatpush.msra.mxu0 0.0
    %192 = vmatpush.msra.mxu0 %v24
    %193 = vmatpush.msra.mxu0 %v23
    %194 = vmatmul.f32.gmra.mxu0 %v176
    %v195 = vpop.f32.mrf.mxu0
    %v196 = vadd.f32 0.0, %v195
    %197 = vdwg.mxu0
    %v198 = vadd.f32 %v77, %v196
    %v199 = vtanh.pop %v198
    %v200 = vsel %vm174, 1, 0
    %vm201 = vcmp.eq.s32.totalorder %v200, 1
    %v202 = vsel %vm201, %v199, %v173
    %vm203 = vmand %vm174, %vm139
    %v205 = vsel %vm145, %v202, 0
    %207 = vmatpush.msra.mxu0 0.0
    %208 = vmatpush.msra.mxu0 0.0
    %209 = vmatpush.msra.mxu0 0.0
    %210 = vmatpush.msra.mxu0 0.0
    %211 = vmatpush.msra.mxu0 0.0
    %212 = vmatpush.msra.mxu0 0.0
    %213 = vmatpush.msra.mxu0 0.0
    %214 = vmatpush.msra.mxu0 0.0
    %215 = vmatpush.msra.mxu0 0.0
    %216 = vmatpush.msra.mxu0 0.0
    %217 = vmatpush.msra.mxu0 0.0
    %218 = vmatpush.msra.mxu0 0.0
    %219 = vmatpush.msra.mxu0 0.0
    %220 = vmatpush.msra.mxu0 0.0
    %221 = vmatpush.msra.mxu0 %v24
    %222 = vmatpush.msra.mxu0 %v23
    %223 = vmatmul.f32.gmra.mxu0 %v205
    %v224 = vpop.f32.mrf.mxu0
    %v225 = vadd.f32 0.0, %v224
    %226 = vdwg.mxu0
    %v227 = vadd.f32 %v80, %v225
    %v228 = vtanh.pop %v227
    %v229 = vsel %vm203, 1, 0
    %vm230 = vcmp.eq.s32.totalorder %v229, 1
    %v231 = vsel %vm230, %v228, %v202
    %vm232 = vmand %vm203, %vm140
    %v234 = vsel %vm145, %v231, 0
    %236 = vmatpush.msra.mxu0 0.0
    %237 = vmatpush.msra.mxu0 0.0
    %238 = vmatpush.msra.mxu0 0.0
    %239 = vmatpush.msra.mxu0 0.0
    %240 = vmatpush.msra.mxu0 0.0
    %241 = vmatpush.msra.mxu0 0.0
    %242 = vmatpush.msra.mxu0 0.0
    %243 = vmatpush.msra.mxu0 0.0
    %244 = vmatpush.msra.mxu0 0.0
    %245 = vmatpush.msra.mxu0 0.0
    %246 = vmatpush.msra.mxu0 0.0
    %247 = vmatpush.msra.mxu0 0.0
    %248 = vmatpush.msra.mxu0 0.0
    %249 = vmatpush.msra.mxu0 0.0
    %250 = vmatpush.msra.mxu0 %v24
    %251 = vmatpush.msra.mxu0 %v23
    %252 = vmatmul.f32.gmra.mxu0 %v234
    %v253 = vpop.f32.mrf.mxu0
    %v254 = vadd.f32 0.0, %v253
    %255 = vdwg.mxu0
    %v256 = vadd.f32 %v83, %v254
    %v257 = vtanh.pop %v256
    %v258 = vsel %vm232, 1, 0
    %vm259 = vcmp.eq.s32.totalorder %v258, 1
    %v260 = vsel %vm259, %v257, %v231
    %vm261 = vmand %vm232, %vm141
    %v263 = vsel %vm145, %v260, 0
    %265 = vmatpush.msra.mxu0 0.0
    %266 = vmatpush.msra.mxu0 0.0
    %267 = vmatpush.msra.mxu0 0.0
    %268 = vmatpush.msra.mxu0 0.0
    %269 = vmatpush.msra.mxu0 0.0
    %270 = vmatpush.msra.mxu0 0.0
    %271 = vmatpush.msra.mxu0 0.0
    %272 = vmatpush.msra.mxu0 0.0
    %273 = vmatpush.msra.mxu0 0.0
    %274 = vmatpush.msra.mxu0 0.0
    %275 = vmatpush.msra.mxu0 0.0
    %276 = vmatpush.msra.mxu0 0.0
    %277 = vmatpush.msra.mxu0 0.0
    %278 = vmatpush.msra.mxu0 0.0
    %279 = vmatpush.msra.mxu0 %v24
    %280 = vmatpush.msra.mxu0 %v23
    %281 = vmatmul.f32.gmra.mxu0 %v263
    %v282 = vpop.f32.mrf.mxu0
    %v283 = vadd.f32 0.0, %v282
    %284 = vdwg.mxu0
    %v285 = vadd.f32 %v86, %v283
    %v286 = vtanh.pop %v285
    %v287 = vsel %vm261, 1, 0
    %vm288 = vcmp.eq.s32.totalorder %v287, 1
    %v289 = vsel %vm288, %v286, %v260
    %vm290 = vmand %vm261, %vm142
    %v292 = vsel %vm145, %v289, 0
    %294 = vmatpush.msra.mxu0 0.0
    %295 = vmatpush.msra.mxu0 0.0
    %296 = vmatpush.msra.mxu0 0.0
    %297 = vmatpush.msra.mxu0 0.0
    %298 = vmatpush.msra.mxu0 0.0
    %299 = vmatpush.msra.mxu0 0.0
    %300 = vmatpush.msra.mxu0 0.0
    %301 = vmatpush.msra.mxu0 0.0
    %302 = vmatpush.msra.mxu0 0.0
    %303 = vmatpush.msra.mxu0 0.0
    %304 = vmatpush.msra.mxu0 0.0
    %305 = vmatpush.msra.mxu0 0.0
    %306 = vmatpush.msra.mxu0 0.0
    %307 = vmatpush.msra.mxu0 0.0
    %308 = vmatpush.msra.mxu0 %v24
    %309 = vmatpush.msra.mxu0 %v23
    %310 = vmatmul.f32.gmra.mxu0 %v292
    %v311 = vpop.f32.mrf.mxu0
    %v312 = vadd.f32 0.0, %v311
    %313 = vdwg.mxu0
    %v314 = vadd.f32 %v89, %v312
    %v315 = vtanh.pop %v314
    %v316 = vsel %vm290, 1, 0
    %vm317 = vcmp.eq.s32.totalorder %v316, 1
    %v318 = vsel %vm317, %v315, %v289
    %vm319 = vmand %vm290, %vm143
    %v321 = vsel %vm145, %v318, 0
    %323 = vmatpush.msra.mxu0 0.0
    %324 = vmatpush.msra.mxu0 0.0
    %325 = vmatpush.msra.mxu0 0.0
    %326 = vmatpush.msra.mxu0 0.0
    %327 = vmatpush.msra.mxu0 0.0
    %328 = vmatpush.msra.mxu0 0.0
    %329 = vmatpush.msra.mxu0 0.0
    %330 = vmatpush.msra.mxu0 0.0
    %331 = vmatpush.msra.mxu0 0.0
    %332 = vmatpush.msra.mxu0 0.0
    %333 = vmatpush.msra.mxu0 0.0
    %334 = vmatpush.msra.mxu0 0.0
    %335 = vmatpush.msra.mxu0 0.0
    %336 = vmatpush.msra.mxu0 0.0
    %337 = vmatpush.msra.mxu0 %v24
    %338 = vmatpush.msra.mxu0 %v23
    %339 = vmatmul.f32.gmra.mxu0 %v321
    %v340 = vpop.f32.mrf.mxu0
    %v341 = vadd.f32 0.0, %v340
    %342 = vdwg.mxu0
    %v343 = vadd.f32 %v92, %v341
    %v344 = vtanh.pop %v343
    %v345 = vsel %vm319, 1, 0
    %vm346 = vcmp.eq.s32.totalorder %v345, 1
    %v347 = vsel %vm346, %v344, %v318
    %vm348 = vmand %vm319, %vm144
    %v350 = vsel %vm145, %v347, 0
    %352 = vmatpush.msra.mxu0 0.0
    %353 = vmatpush.msra.mxu0 0.0
    %354 = vmatpush.msra.mxu0 0.0
    %355 = vmatpush.msra.mxu0 0.0
    %356 = vmatpush.msra.mxu0 0.0
    %357 = vmatpush.msra.mxu0 0.0
    %358 = vmatpush.msra.mxu0 0.0
    %359 = vmatpush.msra.mxu0 0.0
    %360 = vmatpush.msra.mxu0 0.0
    %361 = vmatpush.msra.mxu0 0.0
    %362 = vmatpush.msra.mxu0 0.0
    %363 = vmatpush.msra.mxu0 0.0
    %364 = vmatpush.msra.mxu0 0.0
    %365 = vmatpush.msra.mxu0 0.0
    %366 = vmatpush.msra.mxu0 %v24
    %367 = vmatpush.msra.mxu0 %v23
    %368 = vmatmul.f32.gmra.mxu0 %v350
    %v369 = vpop.f32.mrf.mxu0
    %v370 = vadd.f32 0.0, %v369
    %371 = vdwg.mxu0
    %v372 = vadd.f32 %v95, %v370
    %v373 = vtanh.pop %v372
    %v374 = vsel %vm348, 1, 0
    %vm375 = vcmp.eq.s32.totalorder %v374, 1
    %v376 = vsel %vm375, %v373, %v347
    %v377 = vld [vmem:[%s2] sm:$0xff]
    %v378 = vld [vmem:[%s2 + $0x8] sm:$0xff]
    %v379 = vld [vmem:[%s2 + $0x10] sm:$0xff]
    %v380 = vperm.slane %v379, 0
    %v382 = vsel %vm145, %v376, 0
    %384 = vmatpush.msra.mxu0 0.0
    %385 = vmatpush.msra.mxu0 0.0
    %386 = vmatpush.msra.mxu0 0.0
    %387 = vmatpush.msra.mxu0 0.0
    %388 = vmatpush.msra.mxu0 0.0
    %389 = vmatpush.msra.mxu0 0.0
    %390 = vmatpush.msra.mxu0 0.0
    %391 = vmatpush.msra.mxu0 0.0
    %392 = vmatpush.msra.mxu0 0.0
    %393 = vmatpush.msra.mxu0 0.0
    %394 = vmatpush.msra.mxu0 0.0
    %395 = vmatpush.msra.mxu0 0.0
    %396 = vmatpush.msra.mxu0 0.0
    %397 = vmatpush.msra.mxu0 0.0
    %398 = vmatpush.msra.mxu0 %v378
    %399 = vmatpush.msra.mxu0 %v377
    %400 = vmatmul.f32.gmra.mxu0 %v382
    %v401 = vpop.f32.mrf.mxu0
    %v402 = vadd.f32 %v380, %v401
    %403 = vdwg.mxu0
    %v404 = vmax.f32 %v402, 0.0
    %406 = vset.pattern.permute.xlu0 0
    %407 = vperm.xlu0 %406, %v379
    %v408 = vpop.permute.xlu0 %407
    %v409 = vrot.slane %v379, 1
    %v410 = vrot.slane %v408, 2
    %vm412 = vcmask 523264
    %v413 = vsel %vm412, %v409, 0
    %v416 = vsel %vm412, %v404, 0
    %418 = vmatpush.xpose.msra.mxu0 0.0
    %419 = vmatpush.xpose.msra.mxu0 0.0
    %420 = vmatpush.xpose.msra.mxu0 0.0
    %421 = vmatpush.xpose.msra.mxu0 0.0
    %422 = vmatpush.xpose.msra.mxu0 0.0
    %423 = vmatpush.xpose.msra.mxu0 0.0
    %424 = vmatpush.xpose.msra.mxu0 0.0
    %425 = vmatpush.xpose.msra.mxu0 0.0
    %426 = vmatpush.xpose.msra.mxu0 0.0
    %427 = vmatpush.xpose.msra.mxu0 0.0
    %428 = vmatpush.xpose.msra.mxu0 0.0
    %429 = vmatpush.xpose.msra.mxu0 0.0
    %430 = vmatpush.xpose.msra.mxu0 0.0
    %431 = vmatpush.xpose.msra.mxu0 0.0
    %432 = vmatpush.xpose.msra.mxu0 0.0
    %433 = vmatpush.xpose.msra.mxu0 %v416
    %434 = vmatmul.f32.gmra.mxu0 %v413
    %v435 = vpop.f32.mrf.mxu0
    %v436 = vadd.f32 %v410, %v435
    %437 = vdwg.mxu0
    %vm438 = vcmask 57344
    %439 = vst.msk [vmem:[#allocation2] sm:$0x1] %vm438, %v436
    // Predicated region
    $region14: #{critic_forward.1} parent=1 // pred_check
      _
    $region15: #{critic_forward.1} parent=1 // pred_check_branch
      %441 = sbr.rel (0) target = $region17
    $region16: #{critic_forward.1} parent=1 // pred_region
      %443 = vsyncadd [#allocation3], 0
      %s445 = sshll.u32 [#allocation2], 4
      %s446 = int_to_ptr.vmem [resolvable:$true] %s445
      %s447 = sshll.u32 %s3, 4
      %s448 = int_to_ptr.hbm [resolvable:$true] %s447
      %450 = dma.vmem_to_hbm [thread:$0]  %s446, 16, %s448, [#allocation3]
    $region17: #{critic_forward.1} parent=1 // pred_fallthru
      _
    // Predicated region
    $region18: #{critic_forward.1} parent=1 // pred_check
      _
    $region19: #{critic_forward.1} parent=1 // pred_check_branch
      %452 = sbr.rel (0) target = $region21
    $region20: #{critic_forward.1} parent=1 // pred_region
      %454 = dma.done [#allocation3], 16
    $region21: #{critic_forward.1} parent=1 // pred_fallthru
      _
    %455 = vsyncpa [#allocation3], 1

</llo_original>
